<compile_context>
chip_gen: v5e
topology: v5e:2x2
jax: 0.10.0
libtpu: 0.0.40
codegen_flags: <defaults>
</compile_context>

<pallas_src>
import functools

import jax
import jax.numpy as jnp
from jax.experimental import pallas as pl
from jax.experimental.pallas import tpu as pltpu


def _vmem_budget_bytes():
    """Per-generation scoped-VMEM budget for this kernel (<= 3/4 physical, capped at 64 MiB)."""
    cap = 64 * 1024 * 1024
    try:
        cap = int(pltpu.get_tpu_info().vmem_capacity_bytes)
    except Exception:
        pass  # conservative fallback (safe on v5e/v6e/v7x)
    return min((cap * 3) // 4, 64 * 1024 * 1024)


def _tile_plan(S, H, itemsize):
    """Pick TILE_S from the VMEM budget (bytes-based) instead of a fixed constant."""
    budget = _vmem_budget_bytes()
    lane_pad = 128 * 4                                # one f32 lane-group row (VMEM tiling pad)
    fixed = 2 * H * 128 * itemsize + (2 << 20)        # resident (H,2) weight buffers + slack
    per_row = 2 * H * itemsize + 6 * lane_pad         # hidden dbl-buffer + targets/logits/sig blocks
    cap_rows = (budget - fixed) // per_row
    cap_rows = max(8, min(2048, (cap_rows // 8) * 8))
    if S > cap_rows:
        tile_s = cap_rows
    else:
        # Small S: split into (at least) two tiles so both v7x TensorCores get work.
        tile_s = max(8, (((S + 1) // 2 + 7) // 8) * 8)
        tile_s = min(tile_s, cap_rows)
    return tile_s, budget


def _valnov_kernel(h_ref, wt_ref, b_ref, t_ref, logits_ref, sig_ref, loss_ref,
                   *, seq_len: int, apply_weights: bool):
    # MXU, canonical orientation: (TILE_S, H) @ (H, 2) -> (TILE_S, 2); no large transpose anywhere.
    z = jnp.dot(h_ref[...], wt_ref[...], preferred_element_type=jnp.float32)   # (TILE_S, 2) f32
    z = z + b_ref[...]                                 # (1, 2) bias broadcast (VMEM; no iota/select)

    logits_ref[...] = z
    sig = jax.nn.sigmoid(z)                            # one EUP pass for both heads
    sig_ref[...] = sig

    # val_nov_loss: NaN targets contribute zero.  Per-tile partial SUM (mean finalized in wrapper,
    # so there is no cross-tile dependence and the grid axis stays "parallel").
    tgt = t_ref[:, 0:2]                                # (TILE_S, 2): [should_val, should_nov]
    diff = sig - jnp.where(jnp.isnan(tgt), sig, tgt)
    sq = diff * diff
    lv = sq[:, 0:1]                                    # loss_validity (TILE_S, 1)
    ln = sq[:, 1:2]                                    # loss_novelty  (TILE_S, 1)
    loss_row = 0.5 * (lv * ln) + 0.5 * lv + 0.5 * ln
    if apply_weights:
        loss_row = loss_row * t_ref[:, 2:3]

    # Mask the ragged tail of the last block: out-of-bounds rows are unspecified (may be NaN).
    tile_s = loss_row.shape[0]
    row = pl.program_id(0) * tile_s + jax.lax.broadcasted_iota(jnp.int32, loss_row.shape, 0)
    loss_row = jnp.where(row < seq_len, loss_row, 0.0)
    loss_ref[...] = jnp.sum(loss_row).reshape(1, 1, 1)


def val_nov_regressor_forward(last_hidden_state,
                              w_val, b_val, w_nov, b_nov,
                              should_val, should_nov, weights=None):
    """JAX wrapper around the Pallas kernel.

    last_hidden_state: (B, S, H), f32 or bf16 (bf16 is fed straight to the MXU).
    w_val / w_nov:     (1, H) (PyTorch Linear(H, 1).weight layout)
    b_val / b_nov:     (1,)
    should_val / should_nov / weights: (S, 1) f32 (NaN targets allowed; weights optional)
    """
    cls = last_hidden_state[0]                    # (S, H) — mirrors `.last_hidden_state[0]`
    S, H = cls.shape
    f32 = jnp.float32
    itemsize = jnp.dtype(cls.dtype).itemsize
    has_weights = weights is not None
    n_rows = 3 if has_weights else 2

    tile_s, vmem_budget = _tile_plan(S, H, itemsize)
    num_tiles = (S + tile_s - 1) // tile_s

    # Fused (H, 2) head weights in the hidden-state dtype (bf16 -> native MXU bf16 path).
    w2t = jnp.concatenate([jnp.reshape(w_val, (H, 1)),
                           jnp.reshape(w_nov, (H, 1))], axis=1).astype(cls.dtype)
    # Fused (1, 2) biases, broadcast-added in-kernel.
    b2 = jnp.concatenate([jnp.reshape(b_val, (1,)),
                          jnp.reshape(b_nov, (1,))]).astype(f32).reshape(1, 2)

    # Packed side inputs: columns = [should_val, should_nov, (weights)], shape (S, 2|3), one DMA.
    cols = [jnp.reshape(should_val, (S, 1)).astype(f32),
            jnp.reshape(should_nov, (S, 1)).astype(f32)]
    if has_weights:
        cols.append(jnp.reshape(weights, (S, 1)).astype(f32))
    t = jnp.concatenate(cols, axis=1)

    out_shapes = (
        jax.ShapeDtypeStruct((S, 2), f32),              # raw logits [validity, novelty]
        jax.ShapeDtypeStruct((S, 2), f32),              # sigmoid(logits)
        jax.ShapeDtypeStruct((num_tiles, 1, 1), f32),   # per-tile loss partial sums
    )

    cost = pl.CostEstimate(
        flops=4 * S * H + 16 * S,
        transcendentals=2 * S,
        bytes_accessed=S * H * itemsize + 2 * H * itemsize
                       + S * n_rows * 4 + 4 * S * 4 + num_tiles * 4,
    )

    kernel = functools.partial(_valnov_kernel, seq_len=S, apply_weights=has_weights)
    fn = pl.pallas_call(
        kernel,
        out_shape=out_shapes,
        grid_spec=pltpu.PrefetchScalarGridSpec(
            num_scalar_prefetch=0,
            grid=(num_tiles,),
            in_specs=[
                pl.BlockSpec((tile_s, H), lambda i: (i, 0)),        # hidden states (pipelined, unpadded)
                pl.BlockSpec((H, 2), lambda i: (0, 0)),             # fused head weights (resident)
                pl.BlockSpec((1, 2), lambda i: (0, 0)),             # fused biases
                pl.BlockSpec((tile_s, n_rows), lambda i: (i, 0)),   # packed targets / weights
            ],
            out_specs=[
                pl.BlockSpec((tile_s, 2), lambda i: (i, 0)),        # logits
                pl.BlockSpec((tile_s, 2), lambda i: (i, 0)),        # sigmoids
                pl.BlockSpec((1, 1, 1), lambda i: (i, 0, 0)),       # loss partials
            ],
        ),
        compiler_params=pltpu.CompilerParams(
            # No cross-iteration dependence -> the S axis shards across both TCs on v7x.
            dimension_semantics=("parallel",),
            vmem_limit_bytes=vmem_budget,
        ),
        cost_estimate=cost,
    )
    logits2, sig2, loss_parts = fn(cls, w2t, b2, t)

    logits = jnp.transpose(logits2).reshape(2, S, 1)   # matches torch.stack([validity, novelty])
    validity = sig2[:, 0:1]
    novelty = sig2[:, 1:2]
    # torch.mean divides by all S elements, including NaN-masked rows (they add 0 to the numerator).
    loss = jnp.sum(loss_parts) / S
    return {"logits": logits, "validity": validity, "novelty": novelty, "loss": loss}


def _reference(last_hidden_state, w_val, b_val, w_nov, b_nov, sv, sn, wt=None):
    """Pure-JAX reference mirroring the PyTorch forward (and the wrapper's dtype casts)."""
    cls = last_hidden_state[0]
    H = cls.shape[1]
    hp = jax.lax.Precision.HIGHEST
    h = cls.astype(jnp.float32)
    wv = w_val.astype(cls.dtype).astype(jnp.float32).reshape(H, 1)
    wn = w_nov.astype(cls.dtype).astype(jnp.float32).reshape(H, 1)
    vl = jnp.matmul(h, wv, precision=hp) + b_val.reshape(1, 1)
    nl = jnp.matmul(h, wn, precision=hp) + b_nov.reshape(1, 1)
    iv, inov = jax.nn.sigmoid(vl), jax.nn.sigmoid(nl)
    if wt is None:
        wt = jnp.ones_like(sv)
    lv = (iv - jnp.where(jnp.isnan(sv), iv, sv)) ** 2
    ln = (inov - jnp.where(jnp.isnan(sn), inov, sn)) ** 2
    loss = jnp.mean((0.5 * (lv * ln) + 0.5 * lv + 0.5 * ln) * wt)
    return jnp.stack([vl, nl]), iv, inov, loss


if __name__ == "__main__":
    key = jax.random.PRNGKey(0)

    def make_case(k, B, S, H, dtype, with_weights, nan_idx):
        ks = jax.random.split(k, 8)
        lhs = jax.random.normal(ks[0], (B, S, H), dtype=jnp.float32).astype(dtype)
        bound = 1.0 / (H ** 0.5)   # PyTorch Linear(H, 1) default init range
        w_val = jax.random.uniform(ks[1], (1, H), minval=-bound, maxval=bound, dtype=jnp.float32)
        b_val = jax.random.uniform(ks[2], (1,), minval=-bound, maxval=bound, dtype=jnp.float32)
        w_nov = jax.random.uniform(ks[3], (1, H), minval=-bound, maxval=bound, dtype=jnp.float32)
        b_nov = jax.random.uniform(ks[4], (1,), minval=-bound, maxval=bound, dtype=jnp.float32)
        sv = jax.random.uniform(ks[5], (S, 1), dtype=jnp.float32)
        sn = jax.random.uniform(ks[6], (S, 1), dtype=jnp.float32)
        # Exercise the NaN-target masking path of val_nov_loss.
        for i in nan_idx:
            sv = sv.at[i % S, 0].set(jnp.nan)
            sn = sn.at[(2 * i + 1) % S, 0].set(jnp.nan)
        wt = None
        if with_weights:
            wt = jax.random.uniform(ks[7], (S, 1), minval=0.5, maxval=1.5, dtype=jnp.float32)
        return lhs, w_val, b_val, w_nov, b_nov, sv, sn, wt

    def check(case, atol, rtol, name):
        lhs, w_val, b_val, w_nov, b_nov, sv, sn, wt = case
        out = val_nov_regressor_forward(lhs, w_val, b_val, w_nov, b_nov, sv, sn, wt)
        jax.block_until_ready(out)
        ref_logits, ref_val, ref_nov, ref_loss = _reference(
            lhs, w_val, b_val, w_nov, b_nov, sv, sn, wt)
        assert jnp.allclose(out["logits"], ref_logits, atol=atol, rtol=rtol), f"{name}: logits mismatch"
        assert jnp.allclose(out["validity"], ref_val, atol=atol, rtol=rtol), f"{name}: validity mismatch"
        assert jnp.allclose(out["novelty"], ref_nov, atol=atol, rtol=rtol), f"{name}: novelty mismatch"
        assert jnp.allclose(out["loss"], ref_loss, atol=atol, rtol=rtol), f"{name}: loss mismatch"

    k1, k2, k3 = jax.random.split(key, 3)

    # A) Small f32 case: single tile, per-sample weights, NaN-masked targets.
    check(make_case(k1, B=2, S=8, H=32, dtype=jnp.float32, with_weights=True, nan_idx=(3,)),
          atol=1e-4, rtol=1e-4, name="f32 small")

    # B) Multi-tile, ragged last block (S=1000 -> two tiles, second is partial), weights=None.
    check(make_case(k2, B=2, S=1000, H=128, dtype=jnp.float32, with_weights=False, nan_idx=(7, 400)),
          atol=1e-4, rtol=1e-4, name="f32 tiled ragged")

    # C) bf16 hidden states feed the MXU directly (no in-kernel upcast of the big tensor).
    check(make_case(k3, B=2, S=8, H=32, dtype=jnp.bfloat16, with_weights=True, nan_idx=(5,)),
          atol=2e-3, rtol=2e-2, name="bf16 small")

    print("KERNEL_OK")
</pallas_src>

<mosaic_0001>
module attributes {stable_mosaic.version = 11 : i64} {
  func.func @_valnov_kernel(%arg0: i32, %arg1: memref<8x32xf32, #tpu.memory_space<vmem>>, %arg2: memref<32x2xf32, #tpu.memory_space<vmem>>, %arg3: memref<1x2xf32, #tpu.memory_space<vmem>>, %arg4: memref<8x3xf32, #tpu.memory_space<vmem>>, %arg5: memref<8x2xf32, #tpu.memory_space<vmem>>, %arg6: memref<8x2xf32, #tpu.memory_space<vmem>>, %arg7: memref<1x1x1xf32, #tpu.memory_space<vmem>>) attributes {dimension_semantics = [#tpu.dimension_semantics<parallel>], iteration_bounds = array<i64: 1>, scalar_prefetch = 0 : i64, scratch_operands = 0 : i64, tpu.core_type = #tpu.core_type<tc>, window_params = [{transform_indices = @transform_0, window_bounds = array<i64: 8, 32>}, {pipeline_mode = #tpu.pipeline_mode<synchronous>, transform_indices = @transform_1, window_bounds = array<i64: 32, 2>}, {pipeline_mode = #tpu.pipeline_mode<synchronous>, transform_indices = @transform_2, window_bounds = array<i64: 1, 2>}, {transform_indices = @transform_3, window_bounds = array<i64: 8, 3>}, {transform_indices = @transform_4, window_bounds = array<i64: 8, 2>}, {transform_indices = @transform_5, window_bounds = array<i64: 8, 2>}, {transform_indices = @transform_6, window_bounds = array<i64: 1, 1, 1>}]} {
    %c0 = arith.constant 0 : index
    %c0_0 = arith.constant 0 : index
    %0 = vector.load %arg1[%c0, %c0_0] : memref<8x32xf32, #tpu.memory_space<vmem>>, vector<8x32xf32>
    %c0_1 = arith.constant 0 : index
    %c0_2 = arith.constant 0 : index
    %1 = vector.load %arg2[%c0_1, %c0_2] : memref<32x2xf32, #tpu.memory_space<vmem>>, vector<32x2xf32>
    %cst = arith.constant dense<0.000000e+00> : vector<8x2xf32>
    %2 = tpu.matmul %0, %1, %cst {dimension_numbers = #tpu.dot_dimension_numbers<[1], [0], [0], [1], [0, 0, 1, 1], [], []>} : vector<8x32xf32>, vector<32x2xf32>, vector<8x2xf32> -> vector<8x2xf32>
    %c0_3 = arith.constant 0 : index
    %c0_4 = arith.constant 0 : index
    %3 = vector.load %arg3[%c0_3, %c0_4] : memref<1x2xf32, #tpu.memory_space<vmem>>, vector<1x2xf32>
    %4 = vector.broadcast %3 : vector<1x2xf32> to vector<8x2xf32>
    %5 = arith.addf %2, %4 : vector<8x2xf32>
    %c0_5 = arith.constant 0 : index
    %c0_6 = arith.constant 0 : index
    %6 = vector.load %arg5[%c0_5, %c0_6] : memref<8x2xf32, #tpu.memory_space<vmem>>, vector<8x2xf32>
    tpu.vector_store %arg5[%c0_5, %c0_6], %5 {strides = array<i32>} : memref<8x2xf32, #tpu.memory_space<vmem>>, vector<8x2xf32>,
    %7 = arith.negf %5 : vector<8x2xf32>
    %8 = math.exp %7 : vector<8x2xf32>
    %cst_7 = arith.constant 1.000000e+00 : f32
    %9 = vector.broadcast %cst_7 : f32 to vector<8x2xf32>
    %10 = arith.addf %9, %8 : vector<8x2xf32>
    %11 = arith.divf %9, %10 : vector<8x2xf32>
    %c0_8 = arith.constant 0 : index
    %c0_9 = arith.constant 0 : index
    %12 = vector.load %arg6[%c0_8, %c0_9] : memref<8x2xf32, #tpu.memory_space<vmem>>, vector<8x2xf32>
    tpu.vector_store %arg6[%c0_8, %c0_9], %11 {strides = array<i32>} : memref<8x2xf32, #tpu.memory_space<vmem>>, vector<8x2xf32>,
    %c0_10 = arith.constant 0 : index
    %c0_11 = arith.constant 0 : index
    %13 = vector.load %arg4[%c0_10, %c0_11] : memref<8x3xf32, #tpu.memory_space<vmem>>, vector<8x2xf32>
    %14 = arith.cmpf one, %13, %13 : vector<8x2xf32>
    %15 = arith.select %14, %11, %13 : vector<8x2xi1>, vector<8x2xf32>
    %16 = arith.subf %11, %15 : vector<8x2xf32>
    %17 = arith.mulf %16, %16 : vector<8x2xf32>
    %18 = vector.extract_strided_slice %17 {offsets = [0, 0], sizes = [8, 1], strides = [1, 1]} : vector<8x2xf32> to vector<8x1xf32>
    %19 = vector.extract_strided_slice %17 {offsets = [0, 1], sizes = [8, 1], strides = [1, 1]} : vector<8x2xf32> to vector<8x1xf32>
    %20 = arith.mulf %18, %19 : vector<8x1xf32>
    %cst_12 = arith.constant 5.000000e-01 : f32
    %21 = vector.broadcast %cst_12 : f32 to vector<8x1xf32>
    %22 = arith.mulf %21, %20 : vector<8x1xf32>
    %cst_13 = arith.constant 5.000000e-01 : f32
    %23 = vector.broadcast %cst_13 : f32 to vector<8x1xf32>
    %24 = arith.mulf %23, %18 : vector<8x1xf32>
    %25 = arith.addf %22, %24 : vector<8x1xf32>
    %cst_14 = arith.constant 5.000000e-01 : f32
    %26 = vector.broadcast %cst_14 : f32 to vector<8x1xf32>
    %27 = arith.mulf %26, %19 : vector<8x1xf32>
    %28 = arith.addf %25, %27 : vector<8x1xf32>
    %c0_15 = arith.constant 0 : index
    %c2 = arith.constant 2 : index
    %29 = vector.load %arg4[%c0_15, %c2] : memref<8x3xf32, #tpu.memory_space<vmem>>, vector<8x1xf32>
    %30 = arith.mulf %28, %29 : vector<8x1xf32>
    %c8_i32 = arith.constant 8 : i32
    %31 = arith.muli %arg0, %c8_i32 : i32
    %32 = tpu.iota {dimensions = array<i32: 0>} : vector<8x1xi32>
    %33 = vector.broadcast %31 : i32 to vector<8x1xi32>
    %34 = arith.addi %33, %32 : vector<8x1xi32>
    %c8_i32_16 = arith.constant 8 : i32
    %35 = vector.broadcast %c8_i32_16 : i32 to vector<8x1xi32>
    %36 = arith.cmpi slt, %34, %35 : vector<8x1xi32>
    %cst_17 = arith.constant 0.000000e+00 : f32
    %37 = vector.broadcast %cst_17 : f32 to vector<8x1xf32>
    %38 = arith.select %36, %30, %37 : vector<8x1xi1>, vector<8x1xf32>
    %39 = vector.shape_cast %38 : vector<8x1xf32> to vector<1x8x1xf32>
    %cst_18 = arith.constant dense<0.000000e+00> : vector<1xf32>
    %40 = vector.multi_reduction <add>, %39, %cst_18 [1, 2] : vector<1x8x1xf32> to vector<1xf32>
    %41 = vector.shape_cast %40 : vector<1xf32> to vector<1x1x1xf32>
    %42 = vector.extract %41[0, 0, 0] : f32 from vector<1x1x1xf32>
    %43 = vector.broadcast %42 : f32 to vector<1x1x1xf32>
    %c0_19 = arith.constant 0 : index
    %c0_20 = arith.constant 0 : index
    %c0_21 = arith.constant 0 : index
    %44 = vector.load %arg7[%c0_19, %c0_20, %c0_21] : memref<1x1x1xf32, #tpu.memory_space<vmem>>, vector<1x1x1xf32>
    tpu.vector_store %arg7[%c0_19, %c0_20, %c0_21], %43 {strides = array<i32>} : memref<1x1x1xf32, #tpu.memory_space<vmem>>, vector<1x1x1xf32>,
    return
  }
  func.func @transform_0(%arg0: i32) -> (i32, i32) {
    %c0_i32 = arith.constant 0 : i32
    %c0_i32_0 = arith.constant 0 : i32
    return %arg0, %c0_i32 : i32, i32
  }
  func.func @transform_1(%arg0: i32) -> (i32, i32) {
    %c0_i32 = arith.constant 0 : i32
    %c0_i32_0 = arith.constant 0 : i32
    %c0_i32_1 = arith.constant 0 : i32
    return %c0_i32, %c0_i32_0 : i32, i32
  }
  func.func @transform_2(%arg0: i32) -> (i32, i32) {
    %c0_i32 = arith.constant 0 : i32
    %c0_i32_0 = arith.constant 0 : i32
    %c0_i32_1 = arith.constant 0 : i32
    return %c0_i32, %c0_i32_0 : i32, i32
  }
  func.func @transform_3(%arg0: i32) -> (i32, i32) {
    %c0_i32 = arith.constant 0 : i32
    %c0_i32_0 = arith.constant 0 : i32
    return %arg0, %c0_i32 : i32, i32
  }
  func.func @transform_4(%arg0: i32) -> (i32, i32) {
    %c0_i32 = arith.constant 0 : i32
    %c0_i32_0 = arith.constant 0 : i32
    return %arg0, %c0_i32 : i32, i32
  }
  func.func @transform_5(%arg0: i32) -> (i32, i32) {
    %c0_i32 = arith.constant 0 : i32
    %c0_i32_0 = arith.constant 0 : i32
    return %arg0, %c0_i32 : i32, i32
  }
  func.func @transform_6(%arg0: i32) -> (i32, i32, i32) {
    %c0_i32 = arith.constant 0 : i32
    %c0_i32_0 = arith.constant 0 : i32
    %c0_i32_1 = arith.constant 0 : i32
    return %arg0, %c0_i32, %c0_i32_0 : i32, i32, i32
  }
}

</mosaic_0001>

<llo_original>
// kernel: tpu_custom_call.1
$region0: #{tpu_custom_call.1}
  #allocation0 [shape = 'u32[]', space=smem, size = 0x4, offset = 0x4, fixed_abs, tag = 'smem constant byte address 0x4 - core index']
  #allocation1 [shape = 'u32[72,128]{1,0:T(1,128)}', space=vmem, size = 0x9000, scoped, tag = 'internal scratch']
  %s0 = inlined_call_operand.vmem [shape: f32[8,32], index: 0, kind: input, shape index: {}]
  %s1 = inlined_call_operand.vmem [shape: f32[32,2], index: 1, kind: input, shape index: {}]
  %s2 = inlined_call_operand.vmem [shape: f32[1,2], index: 2, kind: input, shape index: {}]
  %s3 = inlined_call_operand.vmem [shape: f32[8,3], index: 3, kind: input, shape index: {}]
  %s4 = inlined_call_operand.vmem [shape: f32[8,2], index: 4, kind: output, shape index: {0}]
  %s5 = inlined_call_operand.vmem [shape: f32[8,2], index: 5, kind: output, shape index: {1}]
  %s6 = inlined_call_operand.hbm [shape: f32[1,1,1], index: 6, kind: output, shape index: {2}]
  %7 = xla_tuple %s4, %s5, %s6
  %s8 = sld [smem:[#allocation0]]
  $region42: #{tpu_custom_call.1} parent=0
    _
  %s10 = ssub.s32 1, %s8
  %s11 = scalar_select 0, %s10, %s8
  $region1: #{tpu_custom_call.1} parent=0
    #allocation2 [shape = 'u8[512]{0}', space=vmem, size = 0x400, scoped, tag = 'output window, operand 2, single buffered']
    #allocation3 [shape = 's32[1]{0}', space=sflag, size = 0x4, scoped, tag = 'scoped memory for tpu_custom_call.1']
    %12 = vsyncpa [#allocation3], 0
    // Predicated region
    $region2: #{tpu_custom_call.1} parent=1 // pred_check
      _
    $region3: #{tpu_custom_call.1} parent=1 // pred_check_branch
      %14 = sbr.rel (0) target = $region5
    $region4: #{tpu_custom_call.1} parent=1 // pred_region
      _
    $region5: #{tpu_custom_call.1} parent=1 // pred_fallthru
      _
    // Predicated region
    $region6: #{tpu_custom_call.1} parent=1 // pred_check
      _
    $region7: #{tpu_custom_call.1} parent=1 // pred_check_branch
      %16 = sbr.rel (0) target = $region9
    $region8: #{tpu_custom_call.1} parent=1 // pred_region
      _
    $region9: #{tpu_custom_call.1} parent=1 // pred_fallthru
      _
    // Predicated region
    $region10: #{tpu_custom_call.1} parent=1 // pred_check
      _
    $region11: #{tpu_custom_call.1} parent=1 // pred_check_branch
      %18 = sbr.rel (0) target = $region13
    $region12: #{tpu_custom_call.1} parent=1 // pred_region
      _
    $region13: #{tpu_custom_call.1} parent=1 // pred_fallthru
      _
    // Predicated region
    $region14: #{tpu_custom_call.1} parent=1 // pred_check
      _
    $region15: #{tpu_custom_call.1} parent=1 // pred_check_branch
      %20 = sbr.rel (0) target = $region17
    $region16: #{tpu_custom_call.1} parent=1 // pred_region
      _
    $region17: #{tpu_custom_call.1} parent=1 // pred_fallthru
      _
    %v21 = vld [vmem:[%s0] sm:$0xff]
    %v22 = vld [vmem:[%s1] sm:$0xff]
    %v23 = vld [vmem:[%s1 + $0x8] sm:$0xff]
    %v24 = vld [vmem:[%s1 + $0x10] sm:$0xff]
    %v25 = vld [vmem:[%s1 + $0x18] sm:$0xff]
    %v26 = vld [vmem:[%s2] sm:$0x1]
    %v28 = vperm.slane %v26, 0
    %vm30 = vcmask 261120
    %v32 = vsel %vm30, %v21, 0
    %34 = vmatpush.msra.mxu0 0.0
    %35 = vmatpush.msra.mxu0 0.0
    %36 = vmatpush.msra.mxu0 0.0
    %37 = vmatpush.msra.mxu0 0.0
    %38 = vmatpush.msra.mxu0 0.0
    %39 = vmatpush.msra.mxu0 0.0
    %40 = vmatpush.msra.mxu0 0.0
    %41 = vmatpush.msra.mxu0 0.0
    %42 = vmatpush.msra.mxu0 0.0
    %43 = vmatpush.msra.mxu0 0.0
    %44 = vmatpush.msra.mxu0 0.0
    %45 = vmatpush.msra.mxu0 0.0
    %46 = vmatpush.msra.mxu0 %v25
    %47 = vmatpush.msra.mxu0 %v24
    %48 = vmatpush.msra.mxu0 %v23
    %49 = vmatpush.msra.mxu0 %v22
    %50 = vmatmul.f32.gmra.mxu0 %v32
    %v51 = vpop.f32.mrf.mxu0
    %v52 = vadd.f32 %v28, %v51
    %53 = vdwg.mxu0
    %vm54 = vcmask 15360
    %55 = vst.msk [vmem:[%s4] sm:$0xff] %vm54, %v52
    %v56 = vxor.u32 %v52, 2147483648
    %v57 = vmul.f32 %v56, 1.442695
    %v58 = vpow.pop %v57
    %v59 = vadd.f32 %v58, 1.0
    %v60 = vrcp.pop %v59
    %v61 = vmul.f32 %v59, %v60
    %v62 = vsub.f32 1.0, %v61
    %v63 = vmul.f32 %v60, %v62
    %v64 = vadd.f32 %v60, %v63
    %vm65 = vweird.f32 %v59
    %vm66 = vweird.f32 %v60
    %vm67 = vmor %vm65, %vm66
    %v68 = vsel %vm67, %v60, %v64
    %v69 = vand.u32 2147483647, %v59
    %vm70 = vcmp.eq.f32.partialorder %v69, 8.507059e+37
    %v71 = vand.u32 %v59, 2147483648
    %v72 = vor.u32 1.1754944e-38, %v71
    %v73 = vsel %vm70, %v72, %v68
    %v74 = vmul.f32 1.0, %v73
    %75 = vst.msk [vmem:[%s5] sm:$0xff] %vm54, %v74
    %v76 = vld [vmem:[%s3] sm:$0xff]
    %vm77 = vcmp.ne.f32.partialorder %v76, %v76
    %v78 = vsel %vm77, %v74, %v76
    %v79 = vsub.f32 %v74, %v78
    %v80 = vmul.f32 %v79, %v79
    %82 = vrot.lane.b32.xlu0 %v80, 127
    %v83 = vpop.permute.xlu0 %82
    %v85 = vmul.f32 %v80, %v83
    %v86 = vmul.f32 %v85, 0.5
    %v87 = vmul.f32 %v80, 0.5
    %v88 = vadd.f32 %v86, %v87
    %90 = vrot.lane.b32.xlu0 %v87, 127
    %v91 = vpop.permute.xlu0 %90
    %v93 = vadd.f32 %v88, %v91
    %95 = vrot.lane.b32.xlu0 %v76, 126
    %v96 = vpop.permute.xlu0 %95
    %v98 = vmul.f32 %v93, %v96
    %s99 = smul.u32 0, 8
    %v100 = vlaneseq
    %v101 = vshrl.u32 %v100, 7
    %v102 = vstv %s99
    %v103 = vadd.s32 %v102, %v101
    %vm104 = vcmp.lt.s32.totalorder %v103, 8
    %v105 = vsel %vm104, %v98, 0.0
    %vm106 = vcmask 7168
    %v107 = vsel %vm106, %v105, 0.0
    %108 = vadd.xlane.f32.xlu0 %v107
    %v109 = vpop.xlane.xlu0 %108
    %v110 = vrot.slane %v109, 4
    %v111 = vadd.f32 %v109, %v110
    %v112 = vrot.slane %v111, 2
    %v113 = vadd.f32 %v111, %v112
    %v114 = vrot.slane %v113, 1
    %v115 = vadd.f32 %v113, %v114
    %s116 = vtos %v115
    %v117 = vstv %s116
    %vm118 = vcmask 0
    %119 = vst.msk [vmem:[#allocation2] sm:$0x1] %vm118, %v117
    // Predicated region
    $region18: #{tpu_custom_call.1} parent=1 // pred_check
      _
    $region19: #{tpu_custom_call.1} parent=1 // pred_check_branch
      %121 = sbr.rel (0) target = $region21
    $region20: #{tpu_custom_call.1} parent=1 // pred_region
      _
    $region21: #{tpu_custom_call.1} parent=1 // pred_fallthru
      _
    // Predicated region
    $region22: #{tpu_custom_call.1} parent=1 // pred_check
      _
    $region23: #{tpu_custom_call.1} parent=1 // pred_check_branch
      %123 = sbr.rel (0) target = $region25
    $region24: #{tpu_custom_call.1} parent=1 // pred_region
      _
    $region25: #{tpu_custom_call.1} parent=1 // pred_fallthru
      _
    // Predicated region
    $region26: #{tpu_custom_call.1} parent=1 // pred_check
      _
    $region27: #{tpu_custom_call.1} parent=1 // pred_check_branch
      %125 = sbr.rel (0) target = $region29
    $region28: #{tpu_custom_call.1} parent=1 // pred_region
      %127 = vsyncadd [#allocation3], 0
      %s129 = sshll.u32 [#allocation2], 4
      %s130 = int_to_ptr.vmem [resolvable:$true] %s129
      %s131 = sshll.u32 %s6, 4
      %s132 = int_to_ptr.hbm [resolvable:$true] %s131
      %134 = dma.vmem_to_hbm [thread:$0]  %s130, 16, %s132, [#allocation3]
    $region29: #{tpu_custom_call.1} parent=1 // pred_fallthru
      _
    // Predicated region
    $region30: #{tpu_custom_call.1} parent=1 // pred_check
      _
    $region31: #{tpu_custom_call.1} parent=1 // pred_check_branch
      %136 = sbr.rel (0) target = $region33
    $region32: #{tpu_custom_call.1} parent=1 // pred_region
      _
    $region33: #{tpu_custom_call.1} parent=1 // pred_fallthru
      _
    // Predicated region
    $region34: #{tpu_custom_call.1} parent=1 // pred_check
      _
    $region35: #{tpu_custom_call.1} parent=1 // pred_check_branch
      %138 = sbr.rel (0) target = $region37
    $region36: #{tpu_custom_call.1} parent=1 // pred_region
      _
    $region37: #{tpu_custom_call.1} parent=1 // pred_fallthru
      _
    // Predicated region
    $region38: #{tpu_custom_call.1} parent=1 // pred_check
      _
    $region39: #{tpu_custom_call.1} parent=1 // pred_check_branch
      %140 = sbr.rel (0) target = $region41
    $region40: #{tpu_custom_call.1} parent=1 // pred_region
      %142 = dma.done [#allocation3], 16
    $region41: #{tpu_custom_call.1} parent=1 // pred_fallthru
      _
    %143 = vsyncpa [#allocation3], 1

</llo_original>
